<compile_context>
chip_gen: v5e
topology: v5e:2x2
jax: 0.10.0
libtpu: 0.0.40
codegen_flags: <defaults>
</compile_context>

<pallas_src>
import functools

import jax
import jax.numpy as jnp
from jax import lax
from jax.experimental import pallas as pl
from jax.experimental.pallas import tpu as pltpu


# ---------------------------------------------------------------------------
# Tile / VMEM policy
# ---------------------------------------------------------------------------
_TM_DEFAULT = 512
_TN_DEFAULT = 512
_TK_DEFAULT = 1024                       # only used when K must be tiled

# Keep the double-buffered working set comfortably inside v7x's 64 MiB VMEM
# (v5e/v6e have 128 MiB, so this is conservative there).
_SINGLE_K_TILE_BUDGET = 44 * 1024 * 1024
_VMEM_LIMIT_CAP = 56 * 1024 * 1024


def _round_up(x, m):
    return ((x + m - 1) // m) * m


# ---------------------------------------------------------------------------
# Kernels
# ---------------------------------------------------------------------------
def _lin_kernel_single(x_ref, w_ref, o_ref, *, precision):
    # x_ref: (tm, K)  w_ref: (K, tn)  o_ref: (tm, tn) -- one dot, no accumulator.
    o_ref[...] = jnp.dot(
        x_ref[...], w_ref[...],
        preferred_element_type=jnp.float32,
        precision=precision).astype(o_ref.dtype)


def _lin_kernel_single_bias(x_ref, w_ref, b_ref, o_ref, *, precision):
    acc = jnp.dot(x_ref[...], w_ref[...],
                  preferred_element_type=jnp.float32, precision=precision)
    o_ref[...] = (acc + b_ref[...].astype(jnp.float32)).astype(o_ref.dtype)


def _lin_kernel_ktiled(x_ref, w_ref, o_ref, acc_ref, *, precision):
    # K-reduction fallback (very large K): f32 VMEM accumulator, k innermost.
    @pl.when(pl.program_id(2) == 0)
    def _():
        acc_ref[...] = jnp.zeros_like(acc_ref)

    acc_ref[...] += jnp.dot(x_ref[...], w_ref[...],
                            preferred_element_type=jnp.float32,
                            precision=precision)

    @pl.when(pl.program_id(2) == pl.num_programs(2) - 1)
    def _():
        o_ref[...] = acc_ref[...].astype(o_ref.dtype)


def _lin_kernel_ktiled_bias(x_ref, w_ref, b_ref, o_ref, acc_ref, *, precision):
    @pl.when(pl.program_id(2) == 0)
    def _():
        acc_ref[...] = jnp.zeros_like(acc_ref)

    acc_ref[...] += jnp.dot(x_ref[...], w_ref[...],
                            preferred_element_type=jnp.float32,
                            precision=precision)

    @pl.when(pl.program_id(2) == pl.num_programs(2) - 1)
    def _():
        o_ref[...] = (acc_ref[...]
                      + b_ref[...].astype(jnp.float32)).astype(o_ref.dtype)


# ---------------------------------------------------------------------------
# One-time parameter layout prep (outside the hot path)
# ---------------------------------------------------------------------------
def prepare_linear_fixed_params(weight, bias=None, compute_dtype=None):
    """Lay out the PyTorch-layout (out_features, in_features) weight as (K, N)
    once, optionally casting to a compute dtype (e.g. bf16 for the MXU-native
    fast path).  Bias is kept in f32 (it is added into the f32 accumulator)."""
    w_t = jnp.transpose(weight)                              # (K, N)
    if compute_dtype is not None:
        w_t = w_t.astype(compute_dtype)
    b2d = None
    if bias is not None:
        b2d = bias.reshape(1, -1).astype(jnp.float32)        # (1, N)
    return w_t, b2d


# ---------------------------------------------------------------------------
# Forward wrapper
# ---------------------------------------------------------------------------
def linear_fixed_forward(x, w_t, bias2d=None, *,
                         tm=_TM_DEFAULT, tn=_TN_DEFAULT, tk=_TK_DEFAULT,
                         compute_dtype=None, precision=None,
                         max_single_k_bytes=_SINGLE_K_TILE_BUDGET):
    """Forward of Linear_Fixed: x @ weight.T (+ bias).

    x:      (..., in_features)
    w_t:    (in_features, out_features)  -- from prepare_linear_fixed_params
    bias2d: (1, out_features) f32 or None
    returns (..., out_features), dtype of x.
    """
    orig_shape = x.shape
    out_dtype = x.dtype
    K, N = w_t.shape
    assert orig_shape[-1] == K, "in_features mismatch"

    x2d = x.reshape(-1, K)
    if compute_dtype is not None:
        x2d = x2d.astype(compute_dtype)
        if w_t.dtype != compute_dtype:           # normally done in prepare()
            w_t = w_t.astype(compute_dtype)
    M = x2d.shape[0]

    # f32 path matches the PyTorch f32 linear (full-precision MXU passes);
    # bf16 compute_dtype is the fast, single-pass MXU path.
    if precision is None:
        precision = (lax.Precision.HIGHEST if x2d.dtype == jnp.float32
                     else lax.Precision.DEFAULT)

    x_isize = jnp.dtype(x2d.dtype).itemsize
    w_isize = jnp.dtype(w_t.dtype).itemsize
    o_isize = jnp.dtype(out_dtype).itemsize

    # Tile sizes: full-dim blocks for small M/N (always layout-legal), otherwise
    # large lane/sublane-aligned tiles; Pallas masks the uneven edge blocks.
    tm = M if M <= tm else tm
    tn = N if N <= tn else tn

    has_bias = bias2d is not None
    bias_tile_bytes = 2 * tn * 4 if has_bias else 0

    def _buf_bytes(tk_, with_acc):
        b = 2 * tm * tk_ * x_isize + 2 * tk_ * tn * w_isize   # dbl-buffered inputs
        b += 2 * tm * tn * o_isize                            # dbl-buffered output
        b += bias_tile_bytes
        if with_acc:
            b += tm * tn * 4                                  # f32 accumulator
        return b

    # Prefer a single full-K tile: no reduction grid axis, no accumulator.
    single_k = _buf_bytes(K, with_acc=False) <= max_single_k_bytes

    if single_k:
        tk = K
        K_p = K
        gk = 1
        x_p, w_p = x2d, w_t
    else:
        tk = min(tk, K)
        K_p = _round_up(K, tk)
        if K_p != K:
            # Rare huge-K remainder: zero-pad the reduction axis so every K tile
            # is exact.  (In production, pre-pad the weight in prepare() so only
            # x pays this copy.)
            x_p = jnp.pad(x2d, ((0, 0), (0, K_p - K)))
            w_p = jnp.pad(w_t, ((0, K_p - K), (0, 0)))
        else:
            x_p, w_p = x2d, w_t
        gk = K_p // tk

    gm = pl.cdiv(M, tm)
    gn = pl.cdiv(N, tn)
    # v7x megacore: make sure the leading parallel grid axis has >= 2 blocks.
    swap_mn = (gm == 1 and gn > 1)

    if single_k:
        if swap_mn:
            grid = (gn, gm)
            x_map = lambda j, i: (i, 0)
            w_map = lambda j, i: (0, j)
            b_map = lambda j, i: (0, j)
            o_map = lambda j, i: (i, j)
        else:
            grid = (gm, gn)
            x_map = lambda i, j: (i, 0)
            w_map = lambda i, j: (0, j)
            b_map = lambda i, j: (0, j)
            o_map = lambda i, j: (i, j)
        dims = ("parallel", "parallel")
        scratch = []
        base_kernel = _lin_kernel_single_bias if has_bias else _lin_kernel_single
    else:
        if swap_mn:
            grid = (gn, gm, gk)
            x_map = lambda j, i, k: (i, k)
            w_map = lambda j, i, k: (k, j)
            b_map = lambda j, i, k: (0, j)
            o_map = lambda j, i, k: (i, j)
        else:
            grid = (gm, gn, gk)
            x_map = lambda i, j, k: (i, k)
            w_map = lambda i, j, k: (k, j)
            b_map = lambda i, j, k: (0, j)
            o_map = lambda i, j, k: (i, j)
        dims = ("parallel", "parallel", "arbitrary")
        scratch = [pltpu.VMEM((tm, tn), jnp.float32)]
        base_kernel = _lin_kernel_ktiled_bias if has_bias else _lin_kernel_ktiled

    kernel = functools.partial(base_kernel, precision=precision)

    in_specs = [pl.BlockSpec((tm, tk), x_map),
                pl.BlockSpec((tk, tn), w_map)]
    operands = [x_p, w_p]
    if has_bias:
        in_specs.append(pl.BlockSpec((1, tn), b_map))
        operands.append(bias2d)

    # HBM traffic estimate including re-streaming: x is read once per N block,
    # the weight once per M block.
    bytes_accessed = (x_p.size * x_isize * gn
                      + w_p.size * w_isize * gm
                      + M * N * o_isize
                      + (bias2d.size * 4 * gm if has_bias else 0))
    cost = pl.CostEstimate(flops=2 * M * N * K_p,
                           transcendentals=0,
                           bytes_accessed=int(bytes_accessed))

    needed = _buf_bytes(tk, with_acc=not single_k)
    vmem_limit = int(min(max(needed + (4 << 20), 32 << 20), _VMEM_LIMIT_CAP))

    out = pl.pallas_call(
        kernel,
        out_shape=jax.ShapeDtypeStruct((M, N), out_dtype),
        grid_spec=pltpu.PrefetchScalarGridSpec(
            num_scalar_prefetch=0,
            grid=grid,
            in_specs=in_specs,
            out_specs=pl.BlockSpec((tm, tn), o_map),
            scratch_shapes=scratch,
        ),
        compiler_params=pltpu.CompilerParams(
            dimension_semantics=dims,
            vmem_limit_bytes=vmem_limit,
        ),
        cost_estimate=cost,
    )(*operands)

    return out.reshape(*orig_shape[:-1], N)


# ---------------------------------------------------------------------------
# Parameter init matching Linear_Fixed.__init__
# ---------------------------------------------------------------------------
def init_linear_fixed_params(key, in_features, out_features, bias=False,
                             dtype=jnp.float32):
    """weight: kaiming_uniform_ with a=0 (as the module calls it):
    bound = sqrt(6 / fan_in).  bias (if enabled) is zero-initialized."""
    bound = (6.0 / in_features) ** 0.5
    weight = jax.random.uniform(key, (out_features, in_features),
                                minval=-bound, maxval=bound, dtype=dtype)
    b = jnp.zeros((out_features,), dtype=dtype) if bias else None
    return weight, b


# ---------------------------------------------------------------------------
# Demo / self-test
# ---------------------------------------------------------------------------
if __name__ == "__main__":
    key = jax.random.PRNGKey(0)
    keys = jax.random.split(key, 8)

    # --- Test 1: module-default small shape (bias=False), f32, single-K tile. ---
    M1, K1, N1 = 8, 32, 64
    x1 = jax.random.normal(keys[0], (M1, K1), dtype=jnp.float32)
    w1, b1 = init_linear_fixed_params(keys[1], K1, N1, bias=False)
    wt1, b2d1 = prepare_linear_fixed_params(w1, b1)
    out1 = jax.block_until_ready(linear_fixed_forward(x1, wt1, b2d1))
    ref1 = jnp.dot(x1, w1.T, precision=lax.Precision.HIGHEST)
    assert out1.shape == (M1, N1)
    assert jnp.allclose(out1, ref1, atol=1e-3, rtol=1e-3), "test1 mismatch"

    # --- Test 2: bias + non-tile-aligned N (uneven edge blocks, masked writes)
    #             + M-blocks==1 so the megacore grid swap is exercised. ---
    M2, K2, N2 = 384, 640, 768
    x2 = jax.random.normal(keys[2], (M2, K2), dtype=jnp.float32)
    w2, b2 = init_linear_fixed_params(keys[3], K2, N2, bias=True)
    b2 = b2 + 0.5  # non-trivial bias so the add is actually checked
    wt2, b2d2 = prepare_linear_fixed_params(w2, b2)
    out2 = jax.block_until_ready(linear_fixed_forward(x2, wt2, b2d2))
    ref2 = jnp.dot(x2, w2.T, precision=lax.Precision.HIGHEST) + b2
    assert out2.shape == (M2, N2)
    assert jnp.allclose(out2, ref2, atol=1e-3, rtol=1e-3), "test2 mismatch"

    # --- Test 3: force the K-tiled accumulator path (exercises the 3-D grid,
    #             f32 VMEM scratch, and the k==0 / k==last phases). ---
    M3, K3, N3 = 256, 384, 256
    x3 = jax.random.normal(keys[4], (M3, K3), dtype=jnp.float32)
    w3, b3 = init_linear_fixed_params(keys[5], K3, N3, bias=False)
    wt3, b2d3 = prepare_linear_fixed_params(w3, b3)
    out3 = jax.block_until_ready(
        linear_fixed_forward(x3, wt3, b2d3, tm=128, tn=128, tk=128,
                             max_single_k_bytes=0))
    ref3 = jnp.dot(x3, w3.T, precision=lax.Precision.HIGHEST)
    assert out3.shape == (M3, N3)
    assert jnp.allclose(out3, ref3, atol=1e-3, rtol=1e-3), "test3 mismatch"

    # --- Test 4: bf16 compute fast path (MXU-native), rank-3 input, bias. ---
    B4, S4, K4, N4 = 2, 128, 640, 384
    x4 = jax.random.normal(keys[6], (B4, S4, K4), dtype=jnp.float32)
    w4, b4 = init_linear_fixed_params(keys[7], K4, N4, bias=True)
    b4 = b4 + 0.25
    wt4, b2d4 = prepare_linear_fixed_params(w4, b4, compute_dtype=jnp.bfloat16)
    out4 = jax.block_until_ready(
        linear_fixed_forward(x4, wt4, b2d4, compute_dtype=jnp.bfloat16))
    ref4 = jnp.dot(x4.reshape(-1, K4), w4.T,
                   precision=lax.Precision.HIGHEST).reshape(B4, S4, N4) + b4
    assert out4.shape == (B4, S4, N4)
    assert out4.dtype == jnp.float32
    assert jnp.allclose(out4, ref4, atol=1e-1, rtol=2e-2), "test4 (bf16) mismatch"

    print("KERNEL_OK")
</pallas_src>

<mosaic_0001>
module attributes {stable_mosaic.version = 11 : i64} {
  func.func @_lin_kernel_single(%arg0: i32, %arg1: i32, %arg2: memref<8x32xf32, #tpu.memory_space<vmem>>, %arg3: memref<32x64xf32, #tpu.memory_space<vmem>>, %arg4: memref<8x64xf32, #tpu.memory_space<vmem>>) attributes {dimension_semantics = [#tpu.dimension_semantics<parallel>, #tpu.dimension_semantics<parallel>], iteration_bounds = array<i64: 1, 1>, scalar_prefetch = 0 : i64, scratch_operands = 0 : i64, tpu.core_type = #tpu.core_type<tc>, window_params = [{transform_indices = @transform_0, window_bounds = array<i64: 8, 32>}, {transform_indices = @transform_1, window_bounds = array<i64: 32, 64>}, {transform_indices = @transform_2, window_bounds = array<i64: 8, 64>}]} {
    %c0 = arith.constant 0 : index
    %c0_0 = arith.constant 0 : index
    %0 = vector.load %arg2[%c0, %c0_0] : memref<8x32xf32, #tpu.memory_space<vmem>>, vector<8x32xf32>
    %c0_1 = arith.constant 0 : index
    %c0_2 = arith.constant 0 : index
    %1 = vector.load %arg3[%c0_1, %c0_2] : memref<32x64xf32, #tpu.memory_space<vmem>>, vector<32x64xf32>
    %cst = arith.constant dense<0.000000e+00> : vector<8x64xf32>
    %2 = tpu.matmul %0, %1, %cst {dimension_numbers = #tpu.dot_dimension_numbers<[1], [0], [0], [1], [0, 0, 1, 1], [], []>, precision = #tpu.contract_precision<fp32>} : vector<8x32xf32>, vector<32x64xf32>, vector<8x64xf32> -> vector<8x64xf32>
    %c0_3 = arith.constant 0 : index
    %c0_4 = arith.constant 0 : index
    %3 = vector.load %arg4[%c0_3, %c0_4] : memref<8x64xf32, #tpu.memory_space<vmem>>, vector<8x64xf32>
    tpu.vector_store %arg4[%c0_3, %c0_4], %2 {strides = array<i32>} : memref<8x64xf32, #tpu.memory_space<vmem>>, vector<8x64xf32>,
    return
  }
  func.func @transform_0(%arg0: i32, %arg1: i32) -> (i32, i32) {
    %c0_i32 = arith.constant 0 : i32
    %c0_i32_0 = arith.constant 0 : i32
    return %arg0, %c0_i32 : i32, i32
  }
  func.func @transform_1(%arg0: i32, %arg1: i32) -> (i32, i32) {
    %c0_i32 = arith.constant 0 : i32
    %c0_i32_0 = arith.constant 0 : i32
    return %c0_i32, %arg1 : i32, i32
  }
  func.func @transform_2(%arg0: i32, %arg1: i32) -> (i32, i32) {
    %c0_i32 = arith.constant 0 : i32
    return %arg0, %arg1 : i32, i32
  }
}

</mosaic_0001>

<llo_original>
// kernel: tpu_custom_call.1
$region0: #{tpu_custom_call.1}
  #allocation0 [shape = 'u32[]', space=smem, size = 0x4, offset = 0x4, fixed_abs, tag = 'smem constant byte address 0x4 - core index']
  #allocation1 [shape = 'u32[72,128]{1,0:T(1,128)}', space=vmem, size = 0x9000, scoped, tag = 'internal scratch']
  %s0 = inlined_call_operand.hbm [shape: f32[8,32], index: 0, kind: input, shape index: {}]
  %s1 = inlined_call_operand.hbm [shape: f32[32,64], index: 1, kind: input, shape index: {}]
  %s2 = inlined_call_operand.hbm [shape: f32[8,64], index: 2, kind: output, shape index: {}]
  %s3 = sld [smem:[#allocation0]]
  $region26: #{tpu_custom_call.1} parent=0
    _
  %s5 = ssub.s32 1, %s3
  %s6 = scalar_select 0, %s5, %s3
  $region1: #{tpu_custom_call.1} parent=0
    #allocation2 [shape = 'u8[4096]{0}', space=vmem, size = 0x1000, scoped, tag = 'input window, operand 0, single buffered']
    #allocation3 [shape = 's32[1]{0}', space=sflag, size = 0x4, scoped, tag = 'scoped memory for tpu_custom_call.1']
    #allocation4 [shape = 's32[1]{0}', space=sflag, size = 0x4, scoped, tag = 'scoped memory for tpu_custom_call.1']
    #allocation5 [shape = 'u8[16384]{0}', space=vmem, size = 0x4000, scoped, tag = 'input window, operand 1, single buffered']
    #allocation6 [shape = 's32[1]{0}', space=sflag, size = 0x4, scoped, tag = 'scoped memory for tpu_custom_call.1']
    #allocation7 [shape = 'u8[4096]{0}', space=vmem, size = 0x1000, scoped, tag = 'output window, operand 0, single buffered']
    %7 = vsyncpa [#allocation3], 0
    %8 = vsyncpa [#allocation6], 0
    %9 = vsyncpa [#allocation4], 0
    // Predicated region
    $region2: #{tpu_custom_call.1} parent=1 // pred_check
      _
    $region3: #{tpu_custom_call.1} parent=1 // pred_check_branch
      %11 = sbr.rel (0) target = $region5
    $region4: #{tpu_custom_call.1} parent=1 // pred_region
      %13 = vsyncadd [#allocation3], 0
      %s15 = sshll.u32 %s0, 4
      %s16 = int_to_ptr.hbm [resolvable:$true] %s15
      %s17 = sshll.u32 [#allocation2], 4
      %s18 = int_to_ptr.vmem [resolvable:$true] %s17
      %20 = dma.hbm_to_vmem [thread:$0]  %s16, 128, %s18, [#allocation3]
    $region5: #{tpu_custom_call.1} parent=1 // pred_fallthru
      _
    // Predicated region
    $region6: #{tpu_custom_call.1} parent=1 // pred_check
      _
    $region7: #{tpu_custom_call.1} parent=1 // pred_check_branch
      %22 = sbr.rel (0) target = $region9
    $region8: #{tpu_custom_call.1} parent=1 // pred_region
      %24 = vsyncadd [#allocation6], 0
      %s25 = sshll.u32 %s1, 4
      %s26 = int_to_ptr.hbm [resolvable:$true] %s25
      %s27 = sshll.u32 [#allocation5], 4
      %s28 = int_to_ptr.vmem [resolvable:$true] %s27
      %33 = dma.hbm_to_vmem [thread:$0]  %s26, 512, %s28, [#allocation6], 128, 128, 8
    $region9: #{tpu_custom_call.1} parent=1 // pred_fallthru
      _
    // Predicated region
    $region10: #{tpu_custom_call.1} parent=1 // pred_check
      _
    $region11: #{tpu_custom_call.1} parent=1 // pred_check_branch
      %35 = sbr.rel (0) target = $region13
    $region12: #{tpu_custom_call.1} parent=1 // pred_region
      %37 = dma.done [#allocation3], 128
    $region13: #{tpu_custom_call.1} parent=1 // pred_fallthru
      _
    // Predicated region
    $region14: #{tpu_custom_call.1} parent=1 // pred_check
      _
    $region15: #{tpu_custom_call.1} parent=1 // pred_check_branch
      %39 = sbr.rel (0) target = $region17
    $region16: #{tpu_custom_call.1} parent=1 // pred_region
      %41 = dma.done [#allocation6], 512
    $region17: #{tpu_custom_call.1} parent=1 // pred_fallthru
      _
    %v42 = vld [vmem:[#allocation2] sm:$0xff]
    %v43 = vld [vmem:[#allocation5] sm:$0xff]
    %v44 = vld [vmem:[#allocation5 + $0x8] sm:$0xff]
    %v45 = vld [vmem:[#allocation5 + $0x10] sm:$0xff]
    %v46 = vld [vmem:[#allocation5 + $0x18] sm:$0xff]
    %vm47 = vcmask 261120
    %v49 = vsel %vm47, %v42, 0
    %51 = vmatpush.msra.mxu0 0.0
    %52 = vmatpush.msra.mxu0 0.0
    %53 = vmatpush.msra.mxu0 0.0
    %54 = vmatpush.msra.mxu0 0.0
    %55 = vmatpush.msra.mxu0 0.0
    %56 = vmatpush.msra.mxu0 0.0
    %57 = vmatpush.msra.mxu0 0.0
    %58 = vmatpush.msra.mxu0 0.0
    %59 = vmatpush.msra.mxu0 0.0
    %60 = vmatpush.msra.mxu0 0.0
    %61 = vmatpush.msra.mxu0 0.0
    %62 = vmatpush.msra.mxu0 0.0
    %v63 = vand.u32 %v46, 4294901760
    %64 = vmatpush.msra.mxu0 %v63
    %v65 = vand.u32 %v45, 4294901760
    %66 = vmatpush.msra.mxu0 %v65
    %v67 = vand.u32 %v44, 4294901760
    %68 = vmatpush.msra.mxu0 %v67
    %v69 = vand.u32 %v43, 4294901760
    %70 = vmatpush.msra.mxu0 %v69
    %v71 = vand.u32 %v49, 4294901760
    %v72 = vsub.f32 %v49, %v71
    %v73 = vand.u32 %v72, 4294901760
    %v74 = vsub.f32 %v72, %v73
    %v75 = vand.u32 %v74, 4294901760
    %76 = vmatmul.f32.gmra.mxu0 %v75
    %v77 = vpop.f32.mrf.mxu0
    %v78 = vadd.f32 0.0, %v77
    %79 = vdwg.mxu0
    %80 = vmatpush.msra.mxu0 0.0
    %81 = vmatpush.msra.mxu0 0.0
    %82 = vmatpush.msra.mxu0 0.0
    %83 = vmatpush.msra.mxu0 0.0
    %84 = vmatpush.msra.mxu0 0.0
    %85 = vmatpush.msra.mxu0 0.0
    %86 = vmatpush.msra.mxu0 0.0
    %87 = vmatpush.msra.mxu0 0.0
    %88 = vmatpush.msra.mxu0 0.0
    %89 = vmatpush.msra.mxu0 0.0
    %90 = vmatpush.msra.mxu0 0.0
    %91 = vmatpush.msra.mxu0 0.0
    %v92 = vand.u32 %v46, 4294901760
    %v93 = vsub.f32 %v46, %v92
    %v94 = vand.u32 %v93, 4294901760
    %v95 = vsub.f32 %v93, %v94
    %v96 = vand.u32 %v95, 4294901760
    %97 = vmatpush.msra.mxu0 %v96
    %v98 = vand.u32 %v45, 4294901760
    %v99 = vsub.f32 %v45, %v98
    %v100 = vand.u32 %v99, 4294901760
    %v101 = vsub.f32 %v99, %v100
    %v102 = vand.u32 %v101, 4294901760
    %103 = vmatpush.msra.mxu0 %v102
    %v104 = vand.u32 %v44, 4294901760
    %v105 = vsub.f32 %v44, %v104
    %v106 = vand.u32 %v105, 4294901760
    %v107 = vsub.f32 %v105, %v106
    %v108 = vand.u32 %v107, 4294901760
    %109 = vmatpush.msra.mxu0 %v108
    %v110 = vand.u32 %v43, 4294901760
    %v111 = vsub.f32 %v43, %v110
    %v112 = vand.u32 %v111, 4294901760
    %v113 = vsub.f32 %v111, %v112
    %v114 = vand.u32 %v113, 4294901760
    %115 = vmatpush.msra.mxu0 %v114
    %v116 = vand.u32 %v49, 4294901760
    %117 = vmatmul.f32.gmra.mxu0 %v116
    %v118 = vpop.f32.mrf.mxu0
    %v119 = vadd.f32 %v78, %v118
    %120 = vdwg.mxu0
    %121 = vmatpush.msra.mxu0 0.0
    %122 = vmatpush.msra.mxu0 0.0
    %123 = vmatpush.msra.mxu0 0.0
    %124 = vmatpush.msra.mxu0 0.0
    %125 = vmatpush.msra.mxu0 0.0
    %126 = vmatpush.msra.mxu0 0.0
    %127 = vmatpush.msra.mxu0 0.0
    %128 = vmatpush.msra.mxu0 0.0
    %129 = vmatpush.msra.mxu0 0.0
    %130 = vmatpush.msra.mxu0 0.0
    %131 = vmatpush.msra.mxu0 0.0
    %132 = vmatpush.msra.mxu0 0.0
    %v133 = vand.u32 %v46, 4294901760
    %v134 = vsub.f32 %v46, %v133
    %135 = vmatpush.msra.mxu0 %v134
    %v136 = vand.u32 %v45, 4294901760
    %v137 = vsub.f32 %v45, %v136
    %138 = vmatpush.msra.mxu0 %v137
    %v139 = vand.u32 %v44, 4294901760
    %v140 = vsub.f32 %v44, %v139
    %141 = vmatpush.msra.mxu0 %v140
    %v142 = vand.u32 %v43, 4294901760
    %v143 = vsub.f32 %v43, %v142
    %144 = vmatpush.msra.mxu0 %v143
    %v145 = vand.u32 %v49, 4294901760
    %v146 = vsub.f32 %v49, %v145
    %147 = vmatmul.f32.gmra.mxu0 %v146
    %v148 = vpop.f32.mrf.mxu0
    %v149 = vadd.f32 %v119, %v148
    %150 = vdwg.mxu0
    %151 = vmatpush.msra.mxu0 0.0
    %152 = vmatpush.msra.mxu0 0.0
    %153 = vmatpush.msra.mxu0 0.0
    %154 = vmatpush.msra.mxu0 0.0
    %155 = vmatpush.msra.mxu0 0.0
    %156 = vmatpush.msra.mxu0 0.0
    %157 = vmatpush.msra.mxu0 0.0
    %158 = vmatpush.msra.mxu0 0.0
    %159 = vmatpush.msra.mxu0 0.0
    %160 = vmatpush.msra.mxu0 0.0
    %161 = vmatpush.msra.mxu0 0.0
    %162 = vmatpush.msra.mxu0 0.0
    %v163 = vand.u32 %v46, 4294901760
    %164 = vmatpush.msra.mxu0 %v163
    %v165 = vand.u32 %v45, 4294901760
    %166 = vmatpush.msra.mxu0 %v165
    %v167 = vand.u32 %v44, 4294901760
    %168 = vmatpush.msra.mxu0 %v167
    %v169 = vand.u32 %v43, 4294901760
    %170 = vmatpush.msra.mxu0 %v169
    %v171 = vand.u32 %v49, 4294901760
    %v172 = vsub.f32 %v49, %v171
    %v173 = vand.u32 %v172, 4294901760
    %174 = vmatmul.f32.gmra.mxu0 %v173
    %v175 = vpop.f32.mrf.mxu0
    %v176 = vadd.f32 %v149, %v175
    %177 = vdwg.mxu0
    %178 = vmatpush.msra.mxu0 0.0
    %179 = vmatpush.msra.mxu0 0.0
    %180 = vmatpush.msra.mxu0 0.0
    %181 = vmatpush.msra.mxu0 0.0
    %182 = vmatpush.msra.mxu0 0.0
    %183 = vmatpush.msra.mxu0 0.0
    %184 = vmatpush.msra.mxu0 0.0
    %185 = vmatpush.msra.mxu0 0.0
    %186 = vmatpush.msra.mxu0 0.0
    %187 = vmatpush.msra.mxu0 0.0
    %188 = vmatpush.msra.mxu0 0.0
    %189 = vmatpush.msra.mxu0 0.0
    %v190 = vand.u32 %v46, 4294901760
    %v191 = vsub.f32 %v46, %v190
    %v192 = vand.u32 %v191, 4294901760
    %193 = vmatpush.msra.mxu0 %v192
    %v194 = vand.u32 %v45, 4294901760
    %v195 = vsub.f32 %v45, %v194
    %v196 = vand.u32 %v195, 4294901760
    %197 = vmatpush.msra.mxu0 %v196
    %v198 = vand.u32 %v44, 4294901760
    %v199 = vsub.f32 %v44, %v198
    %v200 = vand.u32 %v199, 4294901760
    %201 = vmatpush.msra.mxu0 %v200
    %v202 = vand.u32 %v43, 4294901760
    %v203 = vsub.f32 %v43, %v202
    %v204 = vand.u32 %v203, 4294901760
    %205 = vmatpush.msra.mxu0 %v204
    %v206 = vand.u32 %v49, 4294901760
    %207 = vmatmul.f32.gmra.mxu0 %v206
    %v208 = vpop.f32.mrf.mxu0
    %v209 = vadd.f32 %v176, %v208
    %210 = vdwg.mxu0
    %211 = vmatpush.msra.mxu0 0.0
    %212 = vmatpush.msra.mxu0 0.0
    %213 = vmatpush.msra.mxu0 0.0
    %214 = vmatpush.msra.mxu0 0.0
    %215 = vmatpush.msra.mxu0 0.0
    %216 = vmatpush.msra.mxu0 0.0
    %217 = vmatpush.msra.mxu0 0.0
    %218 = vmatpush.msra.mxu0 0.0
    %219 = vmatpush.msra.mxu0 0.0
    %220 = vmatpush.msra.mxu0 0.0
    %221 = vmatpush.msra.mxu0 0.0
    %222 = vmatpush.msra.mxu0 0.0
    %v223 = vand.u32 %v46, 4294901760
    %224 = vmatpush.msra.mxu0 %v223
    %v225 = vand.u32 %v45, 4294901760
    %226 = vmatpush.msra.mxu0 %v225
    %v227 = vand.u32 %v44, 4294901760
    %228 = vmatpush.msra.mxu0 %v227
    %v229 = vand.u32 %v43, 4294901760
    %230 = vmatpush.msra.mxu0 %v229
    %v231 = vand.u32 %v49, 4294901760
    %232 = vmatmul.f32.gmra.mxu0 %v231
    %v233 = vpop.f32.mrf.mxu0
    %v234 = vadd.f32 %v209, %v233
    %235 = vdwg.mxu0
    %vm236 = vcmask 523264
    %237 = vst.msk [vmem:[#allocation7] sm:$0xff] %vm236, %v234
    // Predicated region
    $region18: #{tpu_custom_call.1} parent=1 // pred_check
      _
    $region19: #{tpu_custom_call.1} parent=1 // pred_check_branch
      %239 = sbr.rel (0) target = $region21
    $region20: #{tpu_custom_call.1} parent=1 // pred_region
      %241 = vsyncadd [#allocation4], 0
      %s243 = sshll.u32 [#allocation7], 4
      %s244 = int_to_ptr.vmem [resolvable:$true] %s243
      %s245 = sshll.u32 %s2, 4
      %s246 = int_to_ptr.hbm [resolvable:$true] %s245
      %248 = dma.vmem_to_hbm [thread:$0]  %s244, 128, %s246, [#allocation4]
    $region21: #{tpu_custom_call.1} parent=1 // pred_fallthru
      _
    // Predicated region
    $region22: #{tpu_custom_call.1} parent=1 // pred_check
      _
    $region23: #{tpu_custom_call.1} parent=1 // pred_check_branch
      %250 = sbr.rel (0) target = $region25
    $region24: #{tpu_custom_call.1} parent=1 // pred_region
      %252 = dma.done [#allocation4], 128
    $region25: #{tpu_custom_call.1} parent=1 // pred_fallthru
      _
    %253 = vsyncpa [#allocation3], 1
    %254 = vsyncpa [#allocation6], 1
    %255 = vsyncpa [#allocation4], 1

</llo_original>
